<compile_context>
chip_gen: v6e
topology: v6e:2x2x1
jax: 0.10.0
libtpu: 0.0.40
codegen_flags: <defaults>
</compile_context>

<pallas_src>
import jax
import jax.numpy as jnp
from jax.experimental import pallas as pl
from jax.experimental.pallas import tpu as pltpu


def _cdiv(a, b):
    return -(-a // b)


def _round_up(x, m):
    return ((x + m - 1) // m) * m


def _sublane_tile(dtype):
    # 8 sublanes of 32-bit; sub-32-bit dtypes pack along sublanes (bf16 -> 16, int8 -> 32).
    return 8 * (4 // max(1, jnp.dtype(dtype).itemsize))


def _vmem_capacity_bytes():
    try:
        cap = getattr(pltpu.get_tpu_info(), "vmem_capacity_bytes", None)
        if cap:
            return int(cap)
    except Exception:
        pass
    return 64 << 20  # conservative fallback (v7x physical VMEM)


def _choose_hw_tile(HW, bytes_per_hw_col, target_block_bytes):
    """Pick T_HW (lane-axis tile): full HW if small / fits, else a multiple of 128."""
    if HW * bytes_per_hw_col <= target_block_bytes or HW <= 128:
        return HW
    t = max(128, (target_block_bytes // bytes_per_hw_col) // 128 * 128)
    t = min(t, (HW // 128) * 128)
    # Prefer a 128-multiple that divides HW evenly (no ragged lane tail to mask).
    for cand in range(int(t), 127, -128):
        if HW % cand == 0:
            return cand
    return int(t)


def _make_wmse_kernel(TB, T_HW, B, HW):
    need_b_mask = (B % TB) != 0
    need_hw_mask = (HW % T_HW) != 0

    def kernel(p_ref, t_ref, w_ref, o_ref):
        # p_ref/t_ref: (TB, C, T_HW); w_ref: (TB, T_HW); o_ref: (1, 1, T_HW)
        p = p_ref[...].astype(jnp.float32)
        t = t_ref[...].astype(jnp.float32)
        w = w_ref[...].astype(jnp.float32)

        d = p - t
        # Reduce diff^2 over channels first, then multiply by weights once:
        #   sum_c(diff^2 * w) == w * sum_c(diff^2)   (exact)
        sq_c = jnp.sum(d * d, axis=1)      # (TB, T_HW)
        wse = sq_c * w                     # (TB, T_HW)

        if need_b_mask or need_hw_mask:
            valid = None
            if need_b_mask:
                row = (pl.program_id(0) * TB
                       + jax.lax.broadcasted_iota(jnp.int32, (TB, T_HW), 0))
                valid = row < B
            if need_hw_mask:
                col = (pl.program_id(1) * T_HW
                       + jax.lax.broadcasted_iota(jnp.int32, (TB, T_HW), 1))
                cmask = col < HW
                valid = cmask if valid is None else (valid & cmask)
            # Mask AFTER the multiply so ragged-tail garbage can never contribute.
            wse = jnp.where(valid, wse, 0.0)

        # Lane-dense per-block partial sums; no cross-lane reduce in the hot loop.
        o_ref[...] = jnp.sum(wse, axis=0)[None, None, :]

    return kernel


def weighted_mse_loss(pred, truth, weights):
    """pred, truth: (B, C, H, W); weights: (B, H, W). Returns scalar f32 loss."""
    B, C, H, W = pred.shape
    HW = H * W
    n_elems = B * C * HW

    p = pred.reshape(B, C, HW)
    t = truth.reshape(B, C, HW)
    w = weights.reshape(B, HW)          # 2-D weights: dense sublane layout in VMEM

    p_isz = p.dtype.itemsize
    t_isz = t.dtype.itemsize
    w_isz = w.dtype.itemsize

    # ---- generation-aware sizing (v7x: 64 MiB VMEM; v5e/v6e: 128 MiB) ----
    vmem_cap = _vmem_capacity_bytes()
    usable = int(0.75 * vmem_cap)
    # needed ~= 2 * (2*pred_blk + w_blk + out_blk) ~= 4.5 * pred_blk  =>  pred_blk ~ usable/5
    target_block_bytes = max(2 << 20, usable // 5)

    C_pad = _round_up(C, _sublane_tile(p.dtype))      # sublane padding of the channel dim
    sub_w = _sublane_tile(w.dtype)                    # sublane tile for the weights block

    # ---- lane (HW) tiling: bounds block size for any image, adds grid parallelism ----
    # TODO(synk): if HW is small and not a multiple of 128, output stores are masked;
    # acceptable since such problems are tiny.
    T_HW = _choose_hw_tile(HW, C_pad * p_isz, target_block_bytes)
    hw_blocks = _cdiv(HW, T_HW)

    # ---- batch tiling (no jnp.pad: ragged tail is masked in-kernel) ----
    per_row_bytes = C_pad * T_HW * p_isz              # one batch row of a pred block
    b_target = max(1, target_block_bytes // per_row_bytes)
    # v7x megacore: ensure >= 2 grid steps when the batch is big enough to split cleanly.
    if hw_blocks == 1 and b_target >= B and B >= 2 * sub_w:
        b_target = _cdiv(B, 2)
    if b_target >= B:
        TB = B
    elif b_target >= sub_w:
        TB = (b_target // sub_w) * sub_w              # dense weights sublanes
    else:
        TB = int(b_target)                            # tiny blocks; padding is negligible
    TB = int(min(TB, B))
    b_blocks = _cdiv(B, TB)

    # ---- padding-aware VMEM budget (default double-buffering) ----
    T_HW_pad = _round_up(T_HW, 128)
    pred_blk = TB * C_pad * T_HW_pad * p_isz
    w_blk = _round_up(TB, sub_w) * T_HW_pad * w_isz
    out_blk = 8 * T_HW_pad * 4                        # (1,1,T_HW): middle dim pads 1->8
    needed = 2 * (2 * pred_blk + w_blk + out_blk)
    vmem_limit = int(min(max(needed + (4 << 20), 32 << 20),
                         max(int(0.9 * vmem_cap), 32 << 20)))

    cost = pl.CostEstimate(
        flops=int(3 * n_elems + 2 * B * HW),
        transcendentals=0,
        bytes_accessed=int(n_elems * p_isz + n_elems * t_isz + B * HW * w_isz
                           + b_blocks * hw_blocks * T_HW * 4),
    )

    kernel = _make_wmse_kernel(TB, T_HW, B, HW)

    partials = pl.pallas_call(
        kernel,
        out_shape=jax.ShapeDtypeStruct((b_blocks, hw_blocks, T_HW), jnp.float32),
        grid_spec=pltpu.PrefetchScalarGridSpec(
            num_scalar_prefetch=0,
            grid=(b_blocks, hw_blocks),
            in_specs=[
                pl.BlockSpec((TB, C, T_HW), lambda i, j: (i, 0, j)),
                pl.BlockSpec((TB, C, T_HW), lambda i, j: (i, 0, j)),
                pl.BlockSpec((TB, T_HW), lambda i, j: (i, j)),
            ],
            out_specs=pl.BlockSpec((1, 1, T_HW), lambda i, j: (i, j, 0)),
        ),
        compiler_params=pltpu.CompilerParams(
            dimension_semantics=("parallel", "parallel"),  # each step owns its output block
            vmem_limit_bytes=vmem_limit,
        ),
        cost_estimate=cost,
    )(p, t, w)

    # Tiny final reduce over lane-dense partials; divide by the TRUE element count.
    return (jnp.sum(partials) / jnp.float32(n_elems)).astype(jnp.float32)


if __name__ == "__main__":
    key = jax.random.PRNGKey(0)
    k1, k2, k3 = jax.random.split(key, 3)

    B, C, H, W = 2, 4, 16, 16
    pred = jax.random.normal(k1, (B, C, H, W), dtype=jnp.float32)
    truth = jax.random.normal(k2, (B, C, H, W), dtype=jnp.float32)
    weights = jax.random.uniform(k3, (B, H, W), dtype=jnp.float32)

    loss = weighted_mse_loss(pred, truth, weights)
    jax.block_until_ready(loss)

    # sanity check against a pure-JAX reference
    ref = jnp.mean(jnp.square(pred - truth) * weights[:, None, :, :])
    assert jnp.allclose(loss, ref, rtol=1e-5, atol=1e-6), (loss, ref)

    print("KERNEL_OK")
</pallas_src>

<mosaic_0001>
module attributes {stable_mosaic.version = 11 : i64} {
  func.func @kernel(%arg0: i32, %arg1: i32, %arg2: memref<2x4x256xf32, #tpu.memory_space<vmem>>, %arg3: memref<2x4x256xf32, #tpu.memory_space<vmem>>, %arg4: memref<2x256xf32, #tpu.memory_space<vmem>>, %arg5: memref<1x1x256xf32, #tpu.memory_space<vmem>>) attributes {dimension_semantics = [#tpu.dimension_semantics<parallel>, #tpu.dimension_semantics<parallel>], iteration_bounds = array<i64: 1, 1>, scalar_prefetch = 0 : i64, scratch_operands = 0 : i64, tpu.core_type = #tpu.core_type<tc>, window_params = [{transform_indices = @transform_0, window_bounds = array<i64: 2, 4, 256>}, {transform_indices = @transform_1, window_bounds = array<i64: 2, 4, 256>}, {transform_indices = @transform_2, window_bounds = array<i64: 2, 256>}, {transform_indices = @transform_3, window_bounds = array<i64: 1, 1, 256>}]} {
    %c0 = arith.constant 0 : index
    %c0_0 = arith.constant 0 : index
    %c0_1 = arith.constant 0 : index
    %0 = vector.load %arg2[%c0, %c0_0, %c0_1] : memref<2x4x256xf32, #tpu.memory_space<vmem>>, vector<2x4x256xf32>
    %c0_2 = arith.constant 0 : index
    %c0_3 = arith.constant 0 : index
    %c0_4 = arith.constant 0 : index
    %1 = vector.load %arg3[%c0_2, %c0_3, %c0_4] : memref<2x4x256xf32, #tpu.memory_space<vmem>>, vector<2x4x256xf32>
    %c0_5 = arith.constant 0 : index
    %c0_6 = arith.constant 0 : index
    %2 = vector.load %arg4[%c0_5, %c0_6] : memref<2x256xf32, #tpu.memory_space<vmem>>, vector<2x256xf32>
    %3 = arith.subf %0, %1 : vector<2x4x256xf32>
    %4 = arith.mulf %3, %3 : vector<2x4x256xf32>
    %cst = arith.constant dense<0.000000e+00> : vector<2x256xf32>
    %5 = vector.multi_reduction <add>, %4, %cst [1] : vector<2x4x256xf32> to vector<2x256xf32>
    %6 = arith.mulf %5, %2 : vector<2x256xf32>
    %cst_7 = arith.constant dense<0.000000e+00> : vector<256xf32>
    %7 = vector.multi_reduction <add>, %6, %cst_7 [0] : vector<2x256xf32> to vector<256xf32>
    %8 = vector.shape_cast %7 : vector<256xf32> to vector<1x1x256xf32>
    %c0_8 = arith.constant 0 : index
    %c0_9 = arith.constant 0 : index
    %c0_10 = arith.constant 0 : index
    %9 = vector.load %arg5[%c0_8, %c0_9, %c0_10] : memref<1x1x256xf32, #tpu.memory_space<vmem>>, vector<1x1x256xf32>
    tpu.vector_store %arg5[%c0_8, %c0_9, %c0_10], %8 {strides = array<i32>} : memref<1x1x256xf32, #tpu.memory_space<vmem>>, vector<1x1x256xf32>,
    return
  }
  func.func @transform_0(%arg0: i32, %arg1: i32) -> (i32, i32, i32) {
    %c0_i32 = arith.constant 0 : i32
    %c0_i32_0 = arith.constant 0 : i32
    return %arg0, %c0_i32, %arg1 : i32, i32, i32
  }
  func.func @transform_1(%arg0: i32, %arg1: i32) -> (i32, i32, i32) {
    %c0_i32 = arith.constant 0 : i32
    %c0_i32_0 = arith.constant 0 : i32
    return %arg0, %c0_i32, %arg1 : i32, i32, i32
  }
  func.func @transform_2(%arg0: i32, %arg1: i32) -> (i32, i32) {
    %c0_i32 = arith.constant 0 : i32
    return %arg0, %arg1 : i32, i32
  }
  func.func @transform_3(%arg0: i32, %arg1: i32) -> (i32, i32, i32) {
    %c0_i32 = arith.constant 0 : i32
    %c0_i32_0 = arith.constant 0 : i32
    return %arg0, %arg1, %c0_i32 : i32, i32, i32
  }
}

</mosaic_0001>

<llo_original>
// kernel: tpu_custom_call.1
$region0: #{tpu_custom_call.1}
  #allocation0 [shape = 'u32[]', space=smem, size = 0x4, offset = 0x4, fixed_abs, tag = 'smem constant byte address 0x4 - core index']
  #allocation1 [shape = 'u32[144,128]{1,0:T(1,128)}', space=vmem, size = 0x12000, scoped, tag = 'internal scratch']
  %s0 = inlined_call_operand.hbm [shape: f32[2,4,256], index: 0, kind: input, shape index: {}]
  %s1 = inlined_call_operand.hbm [shape: f32[2,4,256], index: 1, kind: input, shape index: {}]
  %s2 = inlined_call_operand.hbm [shape: f32[2,256], index: 2, kind: input, shape index: {}]
  %s3 = inlined_call_operand.hbm [shape: f32[1,1,256], index: 3, kind: output, shape index: {}]
  %s4 = sld [smem:[#allocation0]]
  $region34: #{tpu_custom_call.1} parent=0
    _
  %s6 = ssub.s32 1, %s4
  %s7 = scalar_select 0, %s6, %s4
  $region1: #{tpu_custom_call.1} parent=0
    #allocation2 [shape = 'u8[8192]{0}', space=vmem, size = 0x2000, scoped, tag = 'input window, operand 0, single buffered']
    #allocation3 [shape = 's32[1]{0}', space=sflag, size = 0x4, scoped, tag = 'scoped memory for tpu_custom_call.1']
    #allocation4 [shape = 's32[1]{0}', space=sflag, size = 0x4, scoped, tag = 'scoped memory for tpu_custom_call.1']
    #allocation5 [shape = 'u8[8192]{0}', space=vmem, size = 0x2000, scoped, tag = 'input window, operand 1, single buffered']
    #allocation6 [shape = 's32[1]{0}', space=sflag, size = 0x4, scoped, tag = 'scoped memory for tpu_custom_call.1']
    #allocation7 [shape = 'u8[2048]{0}', space=vmem, size = 0x800, scoped, tag = 'input window, operand 2, single buffered']
    #allocation8 [shape = 'u8[1024]{0}', space=vmem, size = 0x400, scoped, tag = 'output window, operand 0, single buffered']
    %8 = vsyncpa [#allocation3], 0
    %9 = vsyncpa [#allocation6], 0
    %10 = vsyncpa [#allocation4], 0
    // Predicated region
    $region2: #{tpu_custom_call.1} parent=1 // pred_check
      _
    $region3: #{tpu_custom_call.1} parent=1 // pred_check_branch
      %12 = sbr.rel (0) target = $region5
    $region4: #{tpu_custom_call.1} parent=1 // pred_region
      %s14 = ssub.s32 256, 256
      %15 = vsyncadd [#allocation3], %s14
      %s16 = sshll.u32 [#allocation2], 4
      %s17 = int_to_ptr.vmem [resolvable:$true] %s16
      %22 = dma.hbm_to_vmem [thread:$0]  %s0, 256, %s17, [#allocation3], 128, 128, 8
    $region5: #{tpu_custom_call.1} parent=1 // pred_fallthru
      _
    // Predicated region
    $region6: #{tpu_custom_call.1} parent=1 // pred_check
      _
    $region7: #{tpu_custom_call.1} parent=1 // pred_check_branch
      %24 = sbr.rel (0) target = $region9
    $region8: #{tpu_custom_call.1} parent=1 // pred_region
      %s26 = ssub.s32 256, 256
      %27 = vsyncadd [#allocation6], %s26
      %s28 = sshll.u32 [#allocation5], 4
      %s29 = int_to_ptr.vmem [resolvable:$true] %s28
      %34 = dma.hbm_to_vmem [thread:$0]  %s1, 256, %s29, [#allocation6], 128, 128, 8
    $region9: #{tpu_custom_call.1} parent=1 // pred_fallthru
      _
    // Predicated region
    $region10: #{tpu_custom_call.1} parent=1 // pred_check
      _
    $region11: #{tpu_custom_call.1} parent=1 // pred_check_branch
      %36 = sbr.rel (0) target = $region13
    $region12: #{tpu_custom_call.1} parent=1 // pred_region
      %s38 = ssub.s32 64, 64
      %39 = vsyncadd [#allocation6], %s38
      %s41 = sshll.u32 [#allocation7], 4
      %s42 = int_to_ptr.vmem [resolvable:$true] %s41
      %44 = dma.hbm_to_vmem [thread:$0]  %s2, 64, %s42, [#allocation6]
    $region13: #{tpu_custom_call.1} parent=1 // pred_fallthru
      _
    // Predicated region
    $region14: #{tpu_custom_call.1} parent=1 // pred_check
      _
    $region15: #{tpu_custom_call.1} parent=1 // pred_check_branch
      %46 = sbr.rel (0) target = $region17
    $region16: #{tpu_custom_call.1} parent=1 // pred_region
      %47 = dma.done [#allocation3], 256
    $region17: #{tpu_custom_call.1} parent=1 // pred_fallthru
      _
    // Predicated region
    $region18: #{tpu_custom_call.1} parent=1 // pred_check
      _
    $region19: #{tpu_custom_call.1} parent=1 // pred_check_branch
      %49 = sbr.rel (0) target = $region21
    $region20: #{tpu_custom_call.1} parent=1 // pred_region
      %50 = dma.done [#allocation6], 256
    $region21: #{tpu_custom_call.1} parent=1 // pred_fallthru
      _
    // Predicated region
    $region22: #{tpu_custom_call.1} parent=1 // pred_check
      _
    $region23: #{tpu_custom_call.1} parent=1 // pred_check_branch
      %52 = sbr.rel (0) target = $region25
    $region24: #{tpu_custom_call.1} parent=1 // pred_region
      %53 = dma.done [#allocation6], 64
    $region25: #{tpu_custom_call.1} parent=1 // pred_fallthru
      _
    %v54 = vld [vmem:[#allocation2] sm:$0xff]
    %v55 = vld [vmem:[#allocation2 + $0x8] sm:$0xff]
    %v56 = vld [vmem:[#allocation5] sm:$0xff]
    %v57 = vld [vmem:[#allocation5 + $0x8] sm:$0xff]
    %v58 = vld [vmem:[#allocation7] sm:$0xf]
    %v59 = vsub.f32 %v54, %v56
    %v60 = vsub.f32 %v55, %v57
    %v61 = vmul.f32 %v59, %v59
    %v62 = vmul.f32 %v60, %v60
    %v65 = vcombine.high %v61, %v61
    %v66 = vcombine.high %v62, %v62
    %vm69 = vcmask 1043456
    %v70 = vsel %vm69, %v61, 0.0
    %v71 = vrot.slane %v70, 4
    %v72 = vadd.f32 %v70, %v71
    %v73 = vrot.slane %v72, 2
    %v74 = vadd.f32 %v72, %v73
    %v75 = vrot.slane %v74, 1
    %v76 = vadd.f32 %v74, %v75
    %v77 = vsel %vm69, %v65, 0.0
    %v78 = vrot.slane %v77, 4
    %v79 = vadd.f32 %v77, %v78
    %v80 = vrot.slane %v79, 2
    %v81 = vadd.f32 %v79, %v80
    %v82 = vrot.slane %v81, 1
    %v83 = vadd.f32 %v81, %v82
    %v84 = vsel %vm69, %v62, 0.0
    %v85 = vrot.slane %v84, 4
    %v86 = vadd.f32 %v84, %v85
    %v87 = vrot.slane %v86, 2
    %v88 = vadd.f32 %v86, %v87
    %v89 = vrot.slane %v88, 1
    %v90 = vadd.f32 %v88, %v89
    %v91 = vsel %vm69, %v66, 0.0
    %v92 = vrot.slane %v91, 4
    %v93 = vadd.f32 %v91, %v92
    %v94 = vrot.slane %v93, 2
    %v95 = vadd.f32 %v93, %v94
    %v96 = vrot.slane %v95, 1
    %v97 = vadd.f32 %v95, %v96
    %v100 = vunpack.c.l.s4 1983009808
    %v101 = vunpack.c.0.s8 %v100
    %v102 = vlaneseq
    %v103 = vshrl.u32 %v102, 7
    %v104 = vsub.s32 %v101, %v103
    %v105 = vrot.slane %v58, %v104
    %v106 = vcombine.high %v105, %v105
    %v107 = vrot.slane %v105, 1
    %v108 = vrot.slane %v106, 1
    %v113 = vmul.f32 %v76, %v105
    %v114 = vmul.f32 %v83, %v106
    %v115 = vmul.f32 %v90, %v107
    %v116 = vmul.f32 %v97, %v108
    %v121 = vrot.slane %v115, 7
    %vm122 = vcmask 1041409
    %v123 = vsel %vm122, %v121, %v113
    %v124 = vrot.slane %v116, 7
    %v125 = vsel %vm122, %v124, %v114
    %vm128 = vcmask 1041408
    %v129 = vsel %vm128, %v123, 0.0
    %v130 = vrot.slane %v129, 4
    %v131 = vadd.f32 %v129, %v130
    %v132 = vrot.slane %v131, 2
    %v133 = vadd.f32 %v131, %v132
    %v134 = vrot.slane %v133, 1
    %v135 = vadd.f32 %v133, %v134
    %v136 = vsel %vm128, %v125, 0.0
    %v137 = vrot.slane %v136, 4
    %v138 = vadd.f32 %v136, %v137
    %v139 = vrot.slane %v138, 2
    %v140 = vadd.f32 %v138, %v139
    %v141 = vrot.slane %v140, 1
    %v142 = vadd.f32 %v140, %v141
    %v145 = vcombine.low %v135, %v142
    %v147 = vunpack.c.l.s4 1966171168
    %v148 = vunpack.c.0.s8 %v147
    %v149 = vlaneseq
    %v150 = vshrl.u32 %v149, 7
    %v151 = vsub.s32 %v148, %v150
    %v152 = vrot.slane %v145, %v151
    %v154 = vunpack.c.l.s4 1966171168
    %v155 = vunpack.c.0.s8 %v154
    %v156 = vlaneseq
    %v157 = vshrl.u32 %v156, 7
    %v158 = vsub.s32 %v155, %v157
    %v159 = vrot.slane %v152, %v158
    %v161 = vlaneseq
    %vm162 = vcmp.ge.s32.totalorder %v161, 0
    %vm163 = vcmp.lt.s32.totalorder %v161, 256
    %vm164 = vmand %vm162, %vm163
    %165 = vst.msk [vmem:[#allocation8] sm:$0x3] %vm164, %v159
    // Predicated region
    $region26: #{tpu_custom_call.1} parent=1 // pred_check
      _
    $region27: #{tpu_custom_call.1} parent=1 // pred_check_branch
      %167 = sbr.rel (0) target = $region29
    $region28: #{tpu_custom_call.1} parent=1 // pred_region
      %s169 = ssub.s32 32, 32
      %170 = vsyncadd [#allocation4], %s169
      %s172 = sshll.u32 [#allocation8], 4
      %s173 = int_to_ptr.vmem [resolvable:$true] %s172
      %175 = dma.vmem_to_hbm [thread:$0]  %s173, 32, %s3, [#allocation4]
    $region29: #{tpu_custom_call.1} parent=1 // pred_fallthru
      _
    // Predicated region
    $region30: #{tpu_custom_call.1} parent=1 // pred_check
      _
    $region31: #{tpu_custom_call.1} parent=1 // pred_check_branch
      %177 = sbr.rel (0) target = $region33
    $region32: #{tpu_custom_call.1} parent=1 // pred_region
      %178 = dma.done [#allocation4], 32
    $region33: #{tpu_custom_call.1} parent=1 // pred_fallthru
      _
    %179 = vsyncpa [#allocation3], 1
    %180 = vsyncpa [#allocation6], 1
    %181 = vsyncpa [#allocation4], 1

</llo_original>
